<compile_context>
chip_gen: v6e
topology: v6e:2x2x1
jax: 0.10.0
libtpu: 0.0.40
codegen_flags: <defaults>
</compile_context>

<pallas_src>
import jax
import jax.numpy as jnp
from jax.experimental import pallas as pl
from jax.experimental.pallas import tpu as pltpu


def attdec_kernel(feat_ref, w1_ref, b1_ref, w3_ref, b3_ref, noise_ref,
                  mus_ref, stds_ref, samp_ref):
    C = noise_ref.shape[1]

    x = feat_ref[...]                                                # (Bt, X)

    # fc1 + LeakyReLU(0.2)
    h1 = jnp.dot(x, w1_ref[...], preferred_element_type=jnp.float32) + b1_ref[...]
    h1 = jnp.where(h1 > 0, h1, 0.2 * h1)                            # (Bt, H)

    # fc3 as a single matmul; mu-half / std-half split is an in-vreg slice
    y = jnp.dot(h1, w3_ref[...], preferred_element_type=jnp.float32) + b3_ref[...]
    mus = y[:, :C]                                                   # (Bt, C)
    stds = jax.nn.sigmoid(y[:, C:])                                  # (Bt, C)

    # reparameterize with externally supplied standard-normal noise
    samp = noise_ref[...] * stds + mus                               # (Bt, C)

    # F.normalize(mus, dim=1): mus / max(||mus||, 1e-12)
    #                        == mus * rsqrt(max(||mus||^2, 1e-24))
    ss_mus = jnp.sum(mus * mus, axis=1, keepdims=True)
    mus_ref[...] = mus * jax.lax.rsqrt(jnp.maximum(ss_mus, 1e-24))

    stds_ref[...] = stds

    # samp / ||samp|| — no eps, faithful to the reference (all-zero row -> inf/nan)
    ss_samp = jnp.sum(samp * samp, axis=1, keepdims=True)
    samp_ref[...] = samp * jax.lax.rsqrt(ss_samp)


def _round_up(x, m):
    return ((x + m - 1) // m) * m


def attdec_forward(feat, w1, b1, w3, b3, noise, *, block_b=512):
    """Returns (mus_normalized, stds, samp_normalized), each (B, C) float32."""
    B, X = feat.shape
    H = w1.shape[1]
    C = noise.shape[1]

    # Batch tile: multiple of 8 (sublane), clamped for small batches, capped at
    # block_b rows so the per-step footprint stays small on every generation
    # (v5e 16 MiB / v6e 32 MiB / v7x 32 MiB default scoped VMEM).
    bt = min(block_b, _round_up(B, 8))
    bt = max(8, _round_up(bt, 8))
    B_pad = _round_up(B, bt)
    if B_pad != B:
        # Rows are independent; padded rows are dropped after the call.
        feat = jnp.pad(feat, ((0, B_pad - B), (0, 0)))
        noise = jnp.pad(noise, ((0, B_pad - B), (0, 0)))
    grid = (B_pad // bt,)

    # Streamed operands: tiled along batch.  Weights/biases: VMEM-resident
    # across all grid steps (index_map always returns block (0, 0)).
    in_specs = [
        pl.BlockSpec((bt, X), lambda i: (i, 0)),       # feat
        pl.BlockSpec((X, H), lambda i: (0, 0)),        # w1
        pl.BlockSpec((1, H), lambda i: (0, 0)),        # b1
        pl.BlockSpec((H, 2 * C), lambda i: (0, 0)),    # w3
        pl.BlockSpec((1, 2 * C), lambda i: (0, 0)),    # b3
        pl.BlockSpec((bt, C), lambda i: (i, 0)),       # noise
    ]
    out_specs = (
        pl.BlockSpec((bt, C), lambda i: (i, 0)),       # mus (normalized)
        pl.BlockSpec((bt, C), lambda i: (i, 0)),       # stds
        pl.BlockSpec((bt, C), lambda i: (i, 0)),       # samp (normalized)
    )
    out_shape = (
        jax.ShapeDtypeStruct((B_pad, C), jnp.float32),
        jax.ShapeDtypeStruct((B_pad, C), jnp.float32),
        jax.ShapeDtypeStruct((B_pad, C), jnp.float32),
    )

    flops = 2 * B_pad * (X * H + H * 2 * C) + 10 * B_pad * (H + 4 * C)
    bytes_accessed = 4 * (B_pad * (X + 4 * C) + X * H + H + H * 2 * C + 2 * C)
    transcendentals = B_pad * (C + 2)   # sigmoid + two rsqrts per row

    mus, stds, samp = pl.pallas_call(
        attdec_kernel,
        grid=grid,
        in_specs=in_specs,
        out_specs=out_specs,
        out_shape=out_shape,
        compiler_params=pltpu.CompilerParams(
            dimension_semantics=("parallel",)),
        cost_estimate=pl.CostEstimate(
            flops=flops,
            bytes_accessed=bytes_accessed,
            transcendentals=transcendentals),
    )(feat, w1, b1, w3, b3, noise)

    if B_pad != B:
        mus, stds, samp = mus[:B], stds[:B], samp[:B]
    return mus, stds, samp


def reference_forward(feat, w1, b1, w3, b3, noise):
    C = noise.shape[1]
    h1 = feat @ w1 + b1
    h1 = jnp.where(h1 > 0, h1, 0.2 * h1)
    y = h1 @ w3 + b3
    mus, std_logits = y[:, :C], y[:, C:]
    stds = jax.nn.sigmoid(std_logits)
    h = noise * stds + mus
    mus_n = mus / jnp.maximum(
        jnp.sqrt(jnp.sum(mus * mus, axis=1, keepdims=True)), 1e-12)
    h_n = h / jnp.sqrt(jnp.sum(h * h, axis=1, keepdims=True))
    return mus_n, stds, h_n


if __name__ == "__main__":
    # opt.X_dim = 32, opt.nghA = 64, opt.C_dim = 16, batch = 8
    B, X_DIM, NGHA, C_DIM = 8, 32, 64, 16

    key = jax.random.PRNGKey(0)
    k_feat, k_w1, k_w3, k_noise = jax.random.split(key, 4)

    feat = jax.random.normal(k_feat, (B, X_DIM), dtype=jnp.float32)

    # weights_init: Linear weights ~ N(0, 0.02), biases = 0
    w1 = 0.02 * jax.random.normal(k_w1, (X_DIM, NGHA), dtype=jnp.float32)
    b1 = jnp.zeros((1, NGHA), dtype=jnp.float32)
    w3 = 0.02 * jax.random.normal(k_w3, (NGHA, 2 * C_DIM), dtype=jnp.float32)
    b3 = jnp.zeros((1, 2 * C_DIM), dtype=jnp.float32)

    # torch.randn_like(mu) equivalent: standard-normal noise, generated
    # host-side so the reparameterization is deterministic and comparable
    # against the pure-JAX reference.
    noise = jax.random.normal(k_noise, (B, C_DIM), dtype=jnp.float32)

    mus, stds, samp = attdec_forward(feat, w1, b1, w3, b3, noise)
    jax.block_until_ready((mus, stds, samp))

    # correctness check against a pure-JAX reference
    r_mus, r_stds, r_samp = reference_forward(feat, w1, b1, w3, b3, noise)
    assert jnp.allclose(mus, r_mus, atol=1e-5, rtol=1e-5)
    assert jnp.allclose(stds, r_stds, atol=1e-5, rtol=1e-5)
    assert jnp.allclose(samp, r_samp, atol=1e-5, rtol=1e-5)

    print("KERNEL_OK")
</pallas_src>

<mosaic_0001>
module attributes {stable_mosaic.version = 11 : i64} {
  func.func @attdec_kernel(%arg0: i32, %arg1: memref<8x32xf32, #tpu.memory_space<vmem>>, %arg2: memref<32x64xf32, #tpu.memory_space<vmem>>, %arg3: memref<1x64xf32, #tpu.memory_space<vmem>>, %arg4: memref<64x32xf32, #tpu.memory_space<vmem>>, %arg5: memref<1x32xf32, #tpu.memory_space<vmem>>, %arg6: memref<8x16xf32, #tpu.memory_space<vmem>>, %arg7: memref<8x16xf32, #tpu.memory_space<vmem>>, %arg8: memref<8x16xf32, #tpu.memory_space<vmem>>, %arg9: memref<8x16xf32, #tpu.memory_space<vmem>>) attributes {dimension_semantics = [#tpu.dimension_semantics<parallel>], iteration_bounds = array<i64: 1>, scalar_prefetch = 0 : i64, scratch_operands = 0 : i64, tpu.core_type = #tpu.core_type<tc>, window_params = [{transform_indices = @transform_0, window_bounds = array<i64: 8, 32>}, {pipeline_mode = #tpu.pipeline_mode<synchronous>, transform_indices = @transform_1, window_bounds = array<i64: 32, 64>}, {pipeline_mode = #tpu.pipeline_mode<synchronous>, transform_indices = @transform_2, window_bounds = array<i64: 1, 64>}, {pipeline_mode = #tpu.pipeline_mode<synchronous>, transform_indices = @transform_3, window_bounds = array<i64: 64, 32>}, {pipeline_mode = #tpu.pipeline_mode<synchronous>, transform_indices = @transform_4, window_bounds = array<i64: 1, 32>}, {transform_indices = @transform_5, window_bounds = array<i64: 8, 16>}, {transform_indices = @transform_6, window_bounds = array<i64: 8, 16>}, {transform_indices = @transform_7, window_bounds = array<i64: 8, 16>}, {transform_indices = @transform_8, window_bounds = array<i64: 8, 16>}]} {
    %c0 = arith.constant 0 : index
    %c0_0 = arith.constant 0 : index
    %0 = vector.load %arg1[%c0, %c0_0] : memref<8x32xf32, #tpu.memory_space<vmem>>, vector<8x32xf32>
    %c0_1 = arith.constant 0 : index
    %c0_2 = arith.constant 0 : index
    %1 = vector.load %arg2[%c0_1, %c0_2] : memref<32x64xf32, #tpu.memory_space<vmem>>, vector<32x64xf32>
    %cst = arith.constant dense<0.000000e+00> : vector<8x64xf32>
    %2 = tpu.matmul %0, %1, %cst {dimension_numbers = #tpu.dot_dimension_numbers<[1], [0], [0], [1], [0, 0, 1, 1], [], []>} : vector<8x32xf32>, vector<32x64xf32>, vector<8x64xf32> -> vector<8x64xf32>
    %c0_3 = arith.constant 0 : index
    %c0_4 = arith.constant 0 : index
    %3 = vector.load %arg3[%c0_3, %c0_4] : memref<1x64xf32, #tpu.memory_space<vmem>>, vector<1x64xf32>
    %4 = vector.broadcast %3 : vector<1x64xf32> to vector<8x64xf32>
    %5 = arith.addf %2, %4 : vector<8x64xf32>
    %cst_5 = arith.constant 0.000000e+00 : f32
    %6 = vector.broadcast %cst_5 : f32 to vector<8x64xf32>
    %7 = arith.cmpf ogt, %5, %6 : vector<8x64xf32>
    %cst_6 = arith.constant 2.000000e-01 : f32
    %8 = vector.broadcast %cst_6 : f32 to vector<8x64xf32>
    %9 = arith.mulf %8, %5 : vector<8x64xf32>
    %10 = arith.select %7, %5, %9 : vector<8x64xi1>, vector<8x64xf32>
    %c0_7 = arith.constant 0 : index
    %c0_8 = arith.constant 0 : index
    %11 = vector.load %arg4[%c0_7, %c0_8] : memref<64x32xf32, #tpu.memory_space<vmem>>, vector<64x32xf32>
    %cst_9 = arith.constant dense<0.000000e+00> : vector<8x32xf32>
    %12 = tpu.matmul %10, %11, %cst_9 {dimension_numbers = #tpu.dot_dimension_numbers<[1], [0], [0], [1], [0, 0, 1, 1], [], []>} : vector<8x64xf32>, vector<64x32xf32>, vector<8x32xf32> -> vector<8x32xf32>
    %c0_10 = arith.constant 0 : index
    %c0_11 = arith.constant 0 : index
    %13 = vector.load %arg5[%c0_10, %c0_11] : memref<1x32xf32, #tpu.memory_space<vmem>>, vector<1x32xf32>
    %14 = vector.broadcast %13 : vector<1x32xf32> to vector<8x32xf32>
    %15 = arith.addf %12, %14 : vector<8x32xf32>
    %16 = vector.extract_strided_slice %15 {offsets = [0, 0], sizes = [8, 16], strides = [1, 1]} : vector<8x32xf32> to vector<8x16xf32>
    %17 = vector.extract_strided_slice %15 {offsets = [0, 16], sizes = [8, 16], strides = [1, 1]} : vector<8x32xf32> to vector<8x16xf32>
    %18 = arith.negf %17 : vector<8x16xf32>
    %19 = math.exp %18 : vector<8x16xf32>
    %cst_12 = arith.constant 1.000000e+00 : f32
    %20 = vector.broadcast %cst_12 : f32 to vector<8x16xf32>
    %21 = arith.addf %20, %19 : vector<8x16xf32>
    %22 = arith.divf %20, %21 : vector<8x16xf32>
    %c0_13 = arith.constant 0 : index
    %c0_14 = arith.constant 0 : index
    %23 = vector.load %arg6[%c0_13, %c0_14] : memref<8x16xf32, #tpu.memory_space<vmem>>, vector<8x16xf32>
    %24 = arith.mulf %23, %22 : vector<8x16xf32>
    %25 = arith.addf %24, %16 : vector<8x16xf32>
    %26 = arith.mulf %16, %16 : vector<8x16xf32>
    %cst_15 = arith.constant dense<0.000000e+00> : vector<8xf32>
    %27 = vector.multi_reduction <add>, %26, %cst_15 [1] : vector<8x16xf32> to vector<8xf32>
    %28 = vector.shape_cast %27 : vector<8xf32> to vector<8x1xf32>
    %cst_16 = arith.constant 1.000000e-24 : f32
    %29 = vector.broadcast %cst_16 : f32 to vector<8x1xf32>
    %30 = arith.maximumf %28, %29 : vector<8x1xf32>
    %31 = math.rsqrt %30 : vector<8x1xf32>
    %32 = vector.broadcast %31 : vector<8x1xf32> to vector<8x16xf32>
    %33 = arith.mulf %16, %32 : vector<8x16xf32>
    %c0_17 = arith.constant 0 : index
    %c0_18 = arith.constant 0 : index
    %34 = vector.load %arg7[%c0_17, %c0_18] : memref<8x16xf32, #tpu.memory_space<vmem>>, vector<8x16xf32>
    tpu.vector_store %arg7[%c0_17, %c0_18], %33 {strides = array<i32>} : memref<8x16xf32, #tpu.memory_space<vmem>>, vector<8x16xf32>,
    %c0_19 = arith.constant 0 : index
    %c0_20 = arith.constant 0 : index
    %35 = vector.load %arg8[%c0_19, %c0_20] : memref<8x16xf32, #tpu.memory_space<vmem>>, vector<8x16xf32>
    tpu.vector_store %arg8[%c0_19, %c0_20], %22 {strides = array<i32>} : memref<8x16xf32, #tpu.memory_space<vmem>>, vector<8x16xf32>,
    %36 = arith.mulf %25, %25 : vector<8x16xf32>
    %cst_21 = arith.constant dense<0.000000e+00> : vector<8xf32>
    %37 = vector.multi_reduction <add>, %36, %cst_21 [1] : vector<8x16xf32> to vector<8xf32>
    %38 = vector.shape_cast %37 : vector<8xf32> to vector<8x1xf32>
    %39 = math.rsqrt %38 : vector<8x1xf32>
    %40 = vector.broadcast %39 : vector<8x1xf32> to vector<8x16xf32>
    %41 = arith.mulf %25, %40 : vector<8x16xf32>
    %c0_22 = arith.constant 0 : index
    %c0_23 = arith.constant 0 : index
    %42 = vector.load %arg9[%c0_22, %c0_23] : memref<8x16xf32, #tpu.memory_space<vmem>>, vector<8x16xf32>
    tpu.vector_store %arg9[%c0_22, %c0_23], %41 {strides = array<i32>} : memref<8x16xf32, #tpu.memory_space<vmem>>, vector<8x16xf32>,
    return
  }
  func.func @transform_0(%arg0: i32) -> (i32, i32) {
    %c0_i32 = arith.constant 0 : i32
    %c0_i32_0 = arith.constant 0 : i32
    return %arg0, %c0_i32 : i32, i32
  }
  func.func @transform_1(%arg0: i32) -> (i32, i32) {
    %c0_i32 = arith.constant 0 : i32
    %c0_i32_0 = arith.constant 0 : i32
    %c0_i32_1 = arith.constant 0 : i32
    return %c0_i32, %c0_i32_0 : i32, i32
  }
  func.func @transform_2(%arg0: i32) -> (i32, i32) {
    %c0_i32 = arith.constant 0 : i32
    %c0_i32_0 = arith.constant 0 : i32
    %c0_i32_1 = arith.constant 0 : i32
    return %c0_i32, %c0_i32_0 : i32, i32
  }
  func.func @transform_3(%arg0: i32) -> (i32, i32) {
    %c0_i32 = arith.constant 0 : i32
    %c0_i32_0 = arith.constant 0 : i32
    %c0_i32_1 = arith.constant 0 : i32
    return %c0_i32, %c0_i32_0 : i32, i32
  }
  func.func @transform_4(%arg0: i32) -> (i32, i32) {
    %c0_i32 = arith.constant 0 : i32
    %c0_i32_0 = arith.constant 0 : i32
    %c0_i32_1 = arith.constant 0 : i32
    return %c0_i32, %c0_i32_0 : i32, i32
  }
  func.func @transform_5(%arg0: i32) -> (i32, i32) {
    %c0_i32 = arith.constant 0 : i32
    %c0_i32_0 = arith.constant 0 : i32
    return %arg0, %c0_i32 : i32, i32
  }
  func.func @transform_6(%arg0: i32) -> (i32, i32) {
    %c0_i32 = arith.constant 0 : i32
    %c0_i32_0 = arith.constant 0 : i32
    return %arg0, %c0_i32 : i32, i32
  }
  func.func @transform_7(%arg0: i32) -> (i32, i32) {
    %c0_i32 = arith.constant 0 : i32
    %c0_i32_0 = arith.constant 0 : i32
    return %arg0, %c0_i32 : i32, i32
  }
  func.func @transform_8(%arg0: i32) -> (i32, i32) {
    %c0_i32 = arith.constant 0 : i32
    %c0_i32_0 = arith.constant 0 : i32
    return %arg0, %c0_i32 : i32, i32
  }
}

</mosaic_0001>

<llo_original>
// kernel: tpu_custom_call.1
$region0: #{tpu_custom_call.1}
  #allocation0 [shape = 'u32[]', space=smem, size = 0x4, offset = 0x4, fixed_abs, tag = 'smem constant byte address 0x4 - core index']
  #allocation1 [shape = 'u32[144,128]{1,0:T(1,128)}', space=vmem, size = 0x12000, scoped, tag = 'internal scratch']
  %s0 = inlined_call_operand.vmem [shape: f32[8,32], index: 0, kind: input, shape index: {}]
  %s1 = inlined_call_operand.vmem [shape: f32[32,64], index: 1, kind: input, shape index: {}]
  %s2 = inlined_call_operand.vmem [shape: f32[1,64], index: 2, kind: input, shape index: {}]
  %s3 = inlined_call_operand.vmem [shape: f32[64,32], index: 3, kind: input, shape index: {}]
  %s4 = inlined_call_operand.vmem [shape: f32[1,32], index: 4, kind: input, shape index: {}]
  %s5 = inlined_call_operand.vmem [shape: f32[8,16], index: 5, kind: input, shape index: {}]
  %s6 = inlined_call_operand.hbm [shape: f32[8,16], index: 6, kind: output, shape index: {0}]
  %s7 = inlined_call_operand.hbm [shape: f32[8,16], index: 7, kind: output, shape index: {1}]
  %s8 = inlined_call_operand.hbm [shape: f32[8,16], index: 8, kind: output, shape index: {2}]
  %9 = xla_tuple %s6, %s7, %s8
  %s10 = sld [smem:[#allocation0]]
  $region50: #{tpu_custom_call.1} parent=0
    _
  %s12 = ssub.s32 1, %s10
  %s13 = scalar_select 0, %s12, %s10
  $region1: #{tpu_custom_call.1} parent=0
    #allocation2 [shape = 'u8[4096]{0}', space=vmem, size = 0x1000, scoped, tag = 'output window, operand 0, single buffered']
    #allocation3 [shape = 's32[1]{0}', space=sflag, size = 0x4, scoped, tag = 'scoped memory for tpu_custom_call.1']
    #allocation4 [shape = 'u8[4096]{0}', space=vmem, size = 0x1000, scoped, tag = 'output window, operand 1, single buffered']
    #allocation5 [shape = 's32[1]{0}', space=sflag, size = 0x4, scoped, tag = 'scoped memory for tpu_custom_call.1']
    #allocation6 [shape = 'u8[4096]{0}', space=vmem, size = 0x1000, scoped, tag = 'output window, operand 2, single buffered']
    %14 = vsyncpa [#allocation3], 0
    %15 = vsyncpa [#allocation5], 0
    // Predicated region
    $region2: #{tpu_custom_call.1} parent=1 // pred_check
      _
    $region3: #{tpu_custom_call.1} parent=1 // pred_check_branch
      %17 = sbr.rel (0) target = $region5
    $region4: #{tpu_custom_call.1} parent=1 // pred_region
      _
    $region5: #{tpu_custom_call.1} parent=1 // pred_fallthru
      _
    // Predicated region
    $region6: #{tpu_custom_call.1} parent=1 // pred_check
      _
    $region7: #{tpu_custom_call.1} parent=1 // pred_check_branch
      %19 = sbr.rel (0) target = $region9
    $region8: #{tpu_custom_call.1} parent=1 // pred_region
      _
    $region9: #{tpu_custom_call.1} parent=1 // pred_fallthru
      _
    // Predicated region
    $region10: #{tpu_custom_call.1} parent=1 // pred_check
      _
    $region11: #{tpu_custom_call.1} parent=1 // pred_check_branch
      %21 = sbr.rel (0) target = $region13
    $region12: #{tpu_custom_call.1} parent=1 // pred_region
      _
    $region13: #{tpu_custom_call.1} parent=1 // pred_fallthru
      _
    // Predicated region
    $region14: #{tpu_custom_call.1} parent=1 // pred_check
      _
    $region15: #{tpu_custom_call.1} parent=1 // pred_check_branch
      %23 = sbr.rel (0) target = $region17
    $region16: #{tpu_custom_call.1} parent=1 // pred_region
      _
    $region17: #{tpu_custom_call.1} parent=1 // pred_fallthru
      _
    // Predicated region
    $region18: #{tpu_custom_call.1} parent=1 // pred_check
      _
    $region19: #{tpu_custom_call.1} parent=1 // pred_check_branch
      %25 = sbr.rel (0) target = $region21
    $region20: #{tpu_custom_call.1} parent=1 // pred_region
      _
    $region21: #{tpu_custom_call.1} parent=1 // pred_fallthru
      _
    // Predicated region
    $region22: #{tpu_custom_call.1} parent=1 // pred_check
      _
    $region23: #{tpu_custom_call.1} parent=1 // pred_check_branch
      %27 = sbr.rel (0) target = $region25
    $region24: #{tpu_custom_call.1} parent=1 // pred_region
      _
    $region25: #{tpu_custom_call.1} parent=1 // pred_fallthru
      _
    %v28 = vld [vmem:[%s0] sm:$0xff]
    %v29 = vld [vmem:[%s1] sm:$0xff]
    %v30 = vld [vmem:[%s1 + $0x8] sm:$0xff]
    %v31 = vld [vmem:[%s1 + $0x10] sm:$0xff]
    %v32 = vld [vmem:[%s1 + $0x18] sm:$0xff]
    %v33 = vld [vmem:[%s2] sm:$0x1]
    %v35 = vlaneseq
    %v36 = vshrl.u32 %v35, 7
    %v37 = vsub.s32 0, %v36
    %v38 = vrot.slane %v33, %v37
    %vm40 = vcmask 261120
    %v42 = vsel %vm40, %v28, 0
    %44 = vmatprep.subr.mxu0 0.0
    %45 = vmatpush1.msra.mxu0 0.0
    %46 = vmatprep.subr.mxu0 0.0
    %47 = vmatpush1.msra.mxu0 0.0
    %48 = vmatprep.subr.mxu0 0.0
    %49 = vmatpush1.msra.mxu0 0.0
    %50 = vmatprep.subr.mxu0 0.0
    %51 = vmatpush1.msra.mxu0 0.0
    %52 = vmatprep.subr.mxu0 0.0
    %53 = vmatpush1.msra.mxu0 0.0
    %54 = vmatprep.subr.mxu0 0.0
    %55 = vmatpush1.msra.mxu0 0.0
    %56 = vmatprep.subr.mxu0 0.0
    %57 = vmatpush1.msra.mxu0 0.0
    %58 = vmatprep.subr.mxu0 0.0
    %59 = vmatpush1.msra.mxu0 0.0
    %60 = vmatprep.subr.mxu0 0.0
    %61 = vmatpush1.msra.mxu0 0.0
    %62 = vmatprep.subr.mxu0 0.0
    %63 = vmatpush1.msra.mxu0 0.0
    %64 = vmatprep.subr.mxu0 0.0
    %65 = vmatpush1.msra.mxu0 0.0
    %66 = vmatprep.subr.mxu0 0.0
    %67 = vmatpush1.msra.mxu0 0.0
    %68 = vmatprep.subr.mxu0 0.0
    %69 = vmatpush1.msra.mxu0 %v32
    %70 = vmatprep.subr.mxu0 0.0
    %71 = vmatpush1.msra.mxu0 %v31
    %72 = vmatprep.subr.mxu0 0.0
    %73 = vmatpush1.msra.mxu0 %v30
    %74 = vmatprep.subr.mxu0 0.0
    %75 = vmatpush1.msra.mxu0 %v29
    %76 = vmatprep.subr.mxu0 0.0
    %77 = vmatpush2.msra.mxu0 0.0
    %78 = vmatprep.subr.mxu0 0.0
    %79 = vmatpush2.msra.mxu0 0.0
    %80 = vmatprep.subr.mxu0 0.0
    %81 = vmatpush2.msra.mxu0 0.0
    %82 = vmatprep.subr.mxu0 0.0
    %83 = vmatpush2.msra.mxu0 0.0
    %84 = vmatprep.subr.mxu0 0.0
    %85 = vmatpush2.msra.mxu0 0.0
    %86 = vmatprep.subr.mxu0 0.0
    %87 = vmatpush2.msra.mxu0 0.0
    %88 = vmatprep.subr.mxu0 0.0
    %89 = vmatpush2.msra.mxu0 0.0
    %90 = vmatprep.subr.mxu0 0.0
    %91 = vmatpush2.msra.mxu0 0.0
    %92 = vmatprep.subr.mxu0 0.0
    %93 = vmatpush2.msra.mxu0 0.0
    %94 = vmatprep.subr.mxu0 0.0
    %95 = vmatpush2.msra.mxu0 0.0
    %96 = vmatprep.subr.mxu0 0.0
    %97 = vmatpush2.msra.mxu0 0.0
    %98 = vmatprep.subr.mxu0 0.0
    %99 = vmatpush2.msra.mxu0 0.0
    %100 = vmatprep.subr.mxu0 0.0
    %101 = vmatpush2.msra.mxu0 0.0
    %102 = vmatprep.subr.mxu0 0.0
    %103 = vmatpush2.msra.mxu0 0.0
    %104 = vmatprep.subr.mxu0 0.0
    %105 = vmatpush2.msra.mxu0 0.0
    %106 = vmatprep.subr.mxu0 0.0
    %107 = vmatpush2.msra.mxu0 0.0
    %108 = vmatprep.mubr.f32.mxu0 0.0
    %109 = vmatmul.mubr.f32.gmra.mxu0 %v42
    %v110 = vpop.f32.mrf.mxu0
    %v111 = vadd.f32 %v38, %v110
    %v112 = vpop.f32.mrf.mxu0
    %113 = vdwg.mxu0
    %vm114 = vcmp.gt.f32.partialorder %v111, 0.0
    %v115 = vmul.f32 %v111, 0.2
    %v116 = vsel %vm114, %v111, %v115
    %v117 = vld [vmem:[%s3] sm:$0xff]
    %v118 = vld [vmem:[%s3 + $0x8] sm:$0xff]
    %v119 = vld [vmem:[%s3 + $0x10] sm:$0xff]
    %v120 = vld [vmem:[%s3 + $0x18] sm:$0xff]
    %v121 = vld [vmem:[%s3 + $0x20] sm:$0xff]
    %v122 = vld [vmem:[%s3 + $0x28] sm:$0xff]
    %v123 = vld [vmem:[%s3 + $0x30] sm:$0xff]
    %v124 = vld [vmem:[%s3 + $0x38] sm:$0xff]
    %v125 = vld [vmem:[%s4] sm:$0x1]
    %v127 = vlaneseq
    %v128 = vshrl.u32 %v127, 7
    %v129 = vsub.s32 0, %v128
    %v130 = vrot.slane %v125, %v129
    %vm132 = vcmask 523264
    %v134 = vsel %vm132, %v116, 0
    %136 = vmatprep.subr.mxu0 0.0
    %137 = vmatpush1.msra.mxu0 0.0
    %138 = vmatprep.subr.mxu0 0.0
    %139 = vmatpush1.msra.mxu0 0.0
    %140 = vmatprep.subr.mxu0 0.0
    %141 = vmatpush1.msra.mxu0 0.0
    %142 = vmatprep.subr.mxu0 0.0
    %143 = vmatpush1.msra.mxu0 0.0
    %144 = vmatprep.subr.mxu0 0.0
    %145 = vmatpush1.msra.mxu0 0.0
    %146 = vmatprep.subr.mxu0 0.0
    %147 = vmatpush1.msra.mxu0 0.0
    %148 = vmatprep.subr.mxu0 0.0
    %149 = vmatpush1.msra.mxu0 0.0
    %150 = vmatprep.subr.mxu0 0.0
    %151 = vmatpush1.msra.mxu0 0.0
    %152 = vmatprep.subr.mxu0 0.0
    %153 = vmatpush1.msra.mxu0 %v124
    %154 = vmatprep.subr.mxu0 0.0
    %155 = vmatpush1.msra.mxu0 %v123
    %156 = vmatprep.subr.mxu0 0.0
    %157 = vmatpush1.msra.mxu0 %v122
    %158 = vmatprep.subr.mxu0 0.0
    %159 = vmatpush1.msra.mxu0 %v121
    %160 = vmatprep.subr.mxu0 0.0
    %161 = vmatpush1.msra.mxu0 %v120
    %162 = vmatprep.subr.mxu0 0.0
    %163 = vmatpush1.msra.mxu0 %v119
    %164 = vmatprep.subr.mxu0 0.0
    %165 = vmatpush1.msra.mxu0 %v118
    %166 = vmatprep.subr.mxu0 0.0
    %167 = vmatpush1.msra.mxu0 %v117
    %168 = vmatprep.subr.mxu0 0.0
    %169 = vmatpush2.msra.mxu0 0.0
    %170 = vmatprep.subr.mxu0 0.0
    %171 = vmatpush2.msra.mxu0 0.0
    %172 = vmatprep.subr.mxu0 0.0
    %173 = vmatpush2.msra.mxu0 0.0
    %174 = vmatprep.subr.mxu0 0.0
    %175 = vmatpush2.msra.mxu0 0.0
    %176 = vmatprep.subr.mxu0 0.0
    %177 = vmatpush2.msra.mxu0 0.0
    %178 = vmatprep.subr.mxu0 0.0
    %179 = vmatpush2.msra.mxu0 0.0
    %180 = vmatprep.subr.mxu0 0.0
    %181 = vmatpush2.msra.mxu0 0.0
    %182 = vmatprep.subr.mxu0 0.0
    %183 = vmatpush2.msra.mxu0 0.0
    %184 = vmatprep.subr.mxu0 0.0
    %185 = vmatpush2.msra.mxu0 0.0
    %186 = vmatprep.subr.mxu0 0.0
    %187 = vmatpush2.msra.mxu0 0.0
    %188 = vmatprep.subr.mxu0 0.0
    %189 = vmatpush2.msra.mxu0 0.0
    %190 = vmatprep.subr.mxu0 0.0
    %191 = vmatpush2.msra.mxu0 0.0
    %192 = vmatprep.subr.mxu0 0.0
    %193 = vmatpush2.msra.mxu0 0.0
    %194 = vmatprep.subr.mxu0 0.0
    %195 = vmatpush2.msra.mxu0 0.0
    %196 = vmatprep.subr.mxu0 0.0
    %197 = vmatpush2.msra.mxu0 0.0
    %198 = vmatprep.subr.mxu0 0.0
    %199 = vmatpush2.msra.mxu0 0.0
    %200 = vmatprep.mubr.f32.mxu0 0.0
    %201 = vmatmul.mubr.f32.gmra.mxu0 %v134
    %v202 = vpop.f32.mrf.mxu0
    %v203 = vadd.f32 %v130, %v202
    %v204 = vpop.f32.mrf.mxu0
    %205 = vdwg.mxu0
    %v206 = vxor.u32 %v203, 2147483648
    %v207 = vmul.f32 %v206, 1.442695
    %v208 = vpow.pop %v207
    %v209 = vadd.f32 %v208, 1.0
    %v210 = vrcp.pop %v209
    %v211 = vmul.f32 1.0, %v210
    %v212 = vld [vmem:[%s5] sm:$0xff]
    %214 = vrot.lane.b32.xlu0 %v211, 112
    %v215 = vpop.permute.xlu0 %214
    %v217 = vmul.f32 %v212, %v215
    %v218 = vadd.f32 %v217, %v203
    %v219 = vmul.f32 %v203, %v203
    %vm220 = vcmask 130048
    %v221 = vsel %vm220, %v219, 0.0
    %222 = vadd.xlane.f32.xlu0 %v221
    %v223 = vpop.xlane.xlu0 %222
    %v224 = vmax.f32 %v223, 1e-24
    %v225 = vrsqrt.pop %v224
    %v226 = vmul.f32 %v203, %v225
    %227 = vst.msk [vmem:[#allocation2] sm:$0xff] %vm220, %v226
    %228 = vst.msk [vmem:[#allocation4] sm:$0xff] %vm220, %v215
    %v229 = vmul.f32 %v218, %v218
    %v230 = vsel %vm220, %v229, 0.0
    %231 = vadd.xlane.f32.xlu0 %v230
    %v232 = vpop.xlane.xlu0 %231
    %v233 = vrsqrt.pop %v232
    %v234 = vmul.f32 %v218, %v233
    %235 = vst.msk [vmem:[#allocation6] sm:$0xff] %vm220, %v234
    // Predicated region
    $region26: #{tpu_custom_call.1} parent=1 // pred_check
      _
    $region27: #{tpu_custom_call.1} parent=1 // pred_check_branch
      %237 = sbr.rel (0) target = $region29
    $region28: #{tpu_custom_call.1} parent=1 // pred_region
      %s239 = ssub.s32 128, 128
      %240 = vsyncadd [#allocation3], %s239
      %s242 = sshll.u32 [#allocation2], 4
      %s243 = int_to_ptr.vmem [resolvable:$true] %s242
      %245 = dma.vmem_to_hbm [thread:$0]  %s243, 128, %s6, [#allocation3]
    $region29: #{tpu_custom_call.1} parent=1 // pred_fallthru
      _
    // Predicated region
    $region30: #{tpu_custom_call.1} parent=1 // pred_check
      _
    $region31: #{tpu_custom_call.1} parent=1 // pred_check_branch
      %247 = sbr.rel (0) target = $region33
    $region32: #{tpu_custom_call.1} parent=1 // pred_region
      %s249 = ssub.s32 128, 128
      %250 = vsyncadd [#allocation5], %s249
      %s252 = sshll.u32 [#allocation4], 4
      %s253 = int_to_ptr.vmem [resolvable:$true] %s252
      %255 = dma.vmem_to_hbm [thread:$0]  %s253, 128, %s7, [#allocation5]
    $region33: #{tpu_custom_call.1} parent=1 // pred_fallthru
      _
    // Predicated region
    $region34: #{tpu_custom_call.1} parent=1 // pred_check
      _
    $region35: #{tpu_custom_call.1} parent=1 // pred_check_branch
      %257 = sbr.rel (0) target = $region37
    $region36: #{tpu_custom_call.1} parent=1 // pred_region
      %s259 = ssub.s32 128, 128
      %260 = vsyncadd [#allocation5], %s259
      %s262 = sshll.u32 [#allocation6], 4
      %s263 = int_to_ptr.vmem [resolvable:$true] %s262
      %265 = dma.vmem_to_hbm [thread:$0]  %s263, 128, %s8, [#allocation5]
    $region37: #{tpu_custom_call.1} parent=1 // pred_fallthru
      _
    // Predicated region
    $region38: #{tpu_custom_call.1} parent=1 // pred_check
      _
    $region39: #{tpu_custom_call.1} parent=1 // pred_check_branch
      %267 = sbr.rel (0) target = $region41
    $region40: #{tpu_custom_call.1} parent=1 // pred_region
      %268 = dma.done [#allocation3], 128
    $region41: #{tpu_custom_call.1} parent=1 // pred_fallthru
      _
    // Predicated region
    $region42: #{tpu_custom_call.1} parent=1 // pred_check
      _
    $region43: #{tpu_custom_call.1} parent=1 // pred_check_branch
      %270 = sbr.rel (0) target = $region45
    $region44: #{tpu_custom_call.1} parent=1 // pred_region
      %271 = dma.done [#allocation5], 128
    $region45: #{tpu_custom_call.1} parent=1 // pred_fallthru
      _
    // Predicated region
    $region46: #{tpu_custom_call.1} parent=1 // pred_check
      _
    $region47: #{tpu_custom_call.1} parent=1 // pred_check_branch
      %273 = sbr.rel (0) target = $region49
    $region48: #{tpu_custom_call.1} parent=1 // pred_region
      %274 = dma.done [#allocation5], 128
    $region49: #{tpu_custom_call.1} parent=1 // pred_fallthru
      _
    %275 = vsyncpa [#allocation3], 1
    %276 = vsyncpa [#allocation5], 1

</llo_original>
